<compile_context>
chip_gen: v5e
topology: v5e:2x2
jax: 0.10.0
libtpu: 0.0.40
codegen_flags: <defaults>
</compile_context>

<pallas_src>
import functools

import jax
import jax.numpy as jnp
from jax.experimental import pallas as pl
from jax.experimental.pallas import tpu as pltpu


def _round_up(x: int, m: int) -> int:
    return ((x + m - 1) // m) * m


def _actor_kernel(x_ref, w1_ref, b1_ref, w2_ref, b2_ref, o_ref, *, max_action):
    # Layer 1: [TB, S] @ [S, Hp] -> [TB, Hp]; bf16 MXU inputs, f32 accumulation.
    h = jnp.dot(x_ref[...], w1_ref[...], preferred_element_type=jnp.float32)
    h = h + b1_ref[...]  # f32 bias add (broadcast [1, Hp])

    # Layer 2 (SpectralApproximator modeled as Linear): [TB, Hp] @ [Hp, Ap].
    z = jnp.dot(h.astype(jnp.bfloat16), w2_ref[...],
                preferred_element_type=jnp.float32)
    z = z + b2_ref[...]

    # Epilogue in f32: tanh on the EUP, compile-time scalar scale, single store.
    o_ref[...] = (max_action * jnp.tanh(z)).astype(o_ref.dtype)


@functools.partial(jax.jit, static_argnames=("max_action", "block_b"))
def actor_forward(state, w1, b1, w2, b2, *, max_action=1.0, block_b=512):
    """Fused Actor forward, mean=True path: max_action * tanh(L2(L1(state)))."""
    if state.ndim == 1:
        state = state[None, :]
    B, S = state.shape
    H = w1.shape[1]
    A = w2.shape[1]

    # Lane-dense padding of the hidden / action (lane) axes.
    Hp = _round_up(H, 128)
    Ap = _round_up(A, 128)

    # Weights cast to bf16 for the MXU; biases stay f32 (accumulator precision).
    w1p = jnp.zeros((S, Hp), jnp.bfloat16).at[:, :H].set(w1.astype(jnp.bfloat16))
    b1p = jnp.zeros((1, Hp), jnp.float32).at[:, :H].set(
        b1.astype(jnp.float32).reshape(1, H))
    w2p = jnp.zeros((Hp, Ap), jnp.bfloat16).at[:H, :A].set(w2.astype(jnp.bfloat16))
    b2p = jnp.zeros((1, Ap), jnp.float32).at[:, :A].set(
        b2.astype(jnp.float32).reshape(1, A))

    # Batch tiling: single block for small B, else block_b-row tiles streamed.
    # State is streamed as bf16 (MXU input precision) -> half the per-tile DMA bytes.
    if B <= block_b:
        TB = B
        Bp = B
        x = state.astype(jnp.bfloat16)
    else:
        TB = block_b  # multiple of 8
        Bp = _round_up(B, TB)
        x = jnp.zeros((Bp, S), jnp.bfloat16).at[:B].set(state.astype(jnp.bfloat16))
    grid = (Bp // TB,)

    kernel = functools.partial(_actor_kernel, max_action=float(max_action))

    out = pl.pallas_call(
        kernel,
        out_shape=jax.ShapeDtypeStruct((Bp, Ap), jnp.float32),
        grid_spec=pltpu.PrefetchScalarGridSpec(
            num_scalar_prefetch=0,
            grid=grid,
            in_specs=[
                pl.BlockSpec((TB, S), lambda i: (i, 0)),    # state tile streams
                pl.BlockSpec((S, Hp), lambda i: (0, 0)),    # W1 resident in VMEM
                pl.BlockSpec((1, Hp), lambda i: (0, 0)),    # b1 resident
                pl.BlockSpec((Hp, Ap), lambda i: (0, 0)),   # W2 resident
                pl.BlockSpec((1, Ap), lambda i: (0, 0)),    # b2 resident
            ],
            out_specs=pl.BlockSpec((TB, Ap), lambda i: (i, 0)),
        ),
        compiler_params=pltpu.CompilerParams(
            dimension_semantics=("parallel",),
        ),
    )(x, w1p, b1p, w2p, b2p)

    # Slice off batch / lane padding.
    return out[:B, :A]


if __name__ == "__main__":
    key = jax.random.PRNGKey(0)
    B, S, H, A = 8, 17, 32, 6          # batch, state_dim, hidden_dim, action_dim
    max_action = 1.0

    k1, k2, k3, k4, k5 = jax.random.split(key, 5)
    state = jax.random.normal(k1, (B, S), jnp.float32)
    w1 = jax.random.normal(k2, (S, H), jnp.float32) / jnp.sqrt(S)
    b1 = 0.1 * jax.random.normal(k3, (H,), jnp.float32)
    w2 = jax.random.normal(k4, (H, A), jnp.float32) / jnp.sqrt(H)
    b2 = 0.1 * jax.random.normal(k5, (A,), jnp.float32)

    out = actor_forward(state, w1, b1, w2, b2, max_action=max_action)
    out = jax.block_until_ready(out)

    # Pure-JAX f32 reference (bf16 MXU inputs -> loose tolerance; tanh is bounded).
    ref = max_action * jnp.tanh((state @ w1 + b1) @ w2 + b2)
    assert out.shape == (B, A), out.shape
    assert jnp.max(jnp.abs(out - ref)) < 5e-2, "mismatch vs reference"

    print("KERNEL_OK")
</pallas_src>

<mosaic_0001>
module attributes {stable_mosaic.version = 11 : i64} {
  func.func @_actor_kernel(%arg0: i32, %arg1: memref<8x17xbf16, #tpu.memory_space<vmem>>, %arg2: memref<17x128xbf16, #tpu.memory_space<vmem>>, %arg3: memref<1x128xf32, #tpu.memory_space<vmem>>, %arg4: memref<128x128xbf16, #tpu.memory_space<vmem>>, %arg5: memref<1x128xf32, #tpu.memory_space<vmem>>, %arg6: memref<8x128xf32, #tpu.memory_space<vmem>>) attributes {dimension_semantics = [#tpu.dimension_semantics<parallel>], iteration_bounds = array<i64: 1>, scalar_prefetch = 0 : i64, scratch_operands = 0 : i64, tpu.core_type = #tpu.core_type<tc>, window_params = [{transform_indices = @transform_0, window_bounds = array<i64: 8, 17>}, {pipeline_mode = #tpu.pipeline_mode<synchronous>, transform_indices = @transform_1, window_bounds = array<i64: 17, 128>}, {pipeline_mode = #tpu.pipeline_mode<synchronous>, transform_indices = @transform_2, window_bounds = array<i64: 1, 128>}, {pipeline_mode = #tpu.pipeline_mode<synchronous>, transform_indices = @transform_3, window_bounds = array<i64: 128, 128>}, {pipeline_mode = #tpu.pipeline_mode<synchronous>, transform_indices = @transform_4, window_bounds = array<i64: 1, 128>}, {transform_indices = @transform_5, window_bounds = array<i64: 8, 128>}]} {
    %c0 = arith.constant 0 : index
    %c0_0 = arith.constant 0 : index
    %0 = vector.load %arg1[%c0, %c0_0] : memref<8x17xbf16, #tpu.memory_space<vmem>>, vector<8x17xbf16>
    %c0_1 = arith.constant 0 : index
    %c0_2 = arith.constant 0 : index
    %1 = vector.load %arg2[%c0_1, %c0_2] : memref<17x128xbf16, #tpu.memory_space<vmem>>, vector<17x128xbf16>
    %cst = arith.constant dense<0.000000e+00> : vector<8x128xf32>
    %2 = tpu.matmul %0, %1, %cst {dimension_numbers = #tpu.dot_dimension_numbers<[1], [0], [0], [1], [0, 0, 1, 1], [], []>} : vector<8x17xbf16>, vector<17x128xbf16>, vector<8x128xf32> -> vector<8x128xf32>
    %c0_3 = arith.constant 0 : index
    %c0_4 = arith.constant 0 : index
    %3 = vector.load %arg3[%c0_3, %c0_4] : memref<1x128xf32, #tpu.memory_space<vmem>>, vector<1x128xf32>
    %4 = vector.broadcast %3 : vector<1x128xf32> to vector<8x128xf32>
    %5 = arith.addf %2, %4 : vector<8x128xf32>
    %6 = arith.truncf %5 : vector<8x128xf32> to vector<8x128xbf16>
    %c0_5 = arith.constant 0 : index
    %c0_6 = arith.constant 0 : index
    %7 = vector.load %arg4[%c0_5, %c0_6] : memref<128x128xbf16, #tpu.memory_space<vmem>>, vector<128x128xbf16>
    %cst_7 = arith.constant dense<0.000000e+00> : vector<8x128xf32>
    %8 = tpu.matmul %6, %7, %cst_7 {dimension_numbers = #tpu.dot_dimension_numbers<[1], [0], [0], [1], [0, 0, 1, 1], [], []>} : vector<8x128xbf16>, vector<128x128xbf16>, vector<8x128xf32> -> vector<8x128xf32>
    %c0_8 = arith.constant 0 : index
    %c0_9 = arith.constant 0 : index
    %9 = vector.load %arg5[%c0_8, %c0_9] : memref<1x128xf32, #tpu.memory_space<vmem>>, vector<1x128xf32>
    %10 = vector.broadcast %9 : vector<1x128xf32> to vector<8x128xf32>
    %11 = arith.addf %8, %10 : vector<8x128xf32>
    %12 = math.tanh %11 : vector<8x128xf32>
    %cst_10 = arith.constant 1.000000e+00 : f32
    %13 = vector.broadcast %cst_10 : f32 to vector<8x128xf32>
    %14 = arith.mulf %13, %12 : vector<8x128xf32>
    %c0_11 = arith.constant 0 : index
    %c0_12 = arith.constant 0 : index
    %15 = vector.load %arg6[%c0_11, %c0_12] : memref<8x128xf32, #tpu.memory_space<vmem>>, vector<8x128xf32>
    tpu.vector_store %arg6[%c0_11, %c0_12], %14 {strides = array<i32>} : memref<8x128xf32, #tpu.memory_space<vmem>>, vector<8x128xf32>,
    return
  }
  func.func @transform_0(%arg0: i32) -> (i32, i32) {
    %c0_i32 = arith.constant 0 : i32
    %c0_i32_0 = arith.constant 0 : i32
    return %arg0, %c0_i32 : i32, i32
  }
  func.func @transform_1(%arg0: i32) -> (i32, i32) {
    %c0_i32 = arith.constant 0 : i32
    %c0_i32_0 = arith.constant 0 : i32
    %c0_i32_1 = arith.constant 0 : i32
    return %c0_i32, %c0_i32_0 : i32, i32
  }
  func.func @transform_2(%arg0: i32) -> (i32, i32) {
    %c0_i32 = arith.constant 0 : i32
    %c0_i32_0 = arith.constant 0 : i32
    %c0_i32_1 = arith.constant 0 : i32
    return %c0_i32, %c0_i32_0 : i32, i32
  }
  func.func @transform_3(%arg0: i32) -> (i32, i32) {
    %c0_i32 = arith.constant 0 : i32
    %c0_i32_0 = arith.constant 0 : i32
    %c0_i32_1 = arith.constant 0 : i32
    return %c0_i32, %c0_i32_0 : i32, i32
  }
  func.func @transform_4(%arg0: i32) -> (i32, i32) {
    %c0_i32 = arith.constant 0 : i32
    %c0_i32_0 = arith.constant 0 : i32
    %c0_i32_1 = arith.constant 0 : i32
    return %c0_i32, %c0_i32_0 : i32, i32
  }
  func.func @transform_5(%arg0: i32) -> (i32, i32) {
    %c0_i32 = arith.constant 0 : i32
    %c0_i32_0 = arith.constant 0 : i32
    return %arg0, %c0_i32 : i32, i32
  }
}

</mosaic_0001>

<llo_original>
// kernel: actor_forward.1
$region0: #{actor_forward.1}
  #allocation0 [shape = 'u32[]', space=smem, size = 0x4, offset = 0x4, fixed_abs, tag = 'smem constant byte address 0x4 - core index']
  #allocation1 [shape = 'u32[72,128]{1,0:T(1,128)}', space=vmem, size = 0x9000, scoped, tag = 'internal scratch']
  %s0 = inlined_call_operand.vmem [shape: bf16[8,17], index: 0, kind: input, shape index: {}]
  %s1 = inlined_call_operand.vmem [shape: bf16[17,128], index: 1, kind: input, shape index: {}]
  %s2 = inlined_call_operand.vmem [shape: f32[1,128], index: 2, kind: input, shape index: {}]
  %s3 = inlined_call_operand.vmem [shape: bf16[128,128], index: 3, kind: input, shape index: {}]
  %s4 = inlined_call_operand.vmem [shape: f32[1,128], index: 4, kind: input, shape index: {}]
  %s5 = inlined_call_operand.hbm [shape: f32[8,128], index: 5, kind: output, shape index: {}]
  %s6 = sld [smem:[#allocation0]]
  $region30: #{actor_forward.1} parent=0
    _
  %s8 = ssub.s32 1, %s6
  %s9 = scalar_select 0, %s8, %s6
  $region1: #{actor_forward.1} parent=0
    #allocation2 [shape = 'u8[4096]{0}', space=vmem, size = 0x1000, scoped, tag = 'output window, operand 0, single buffered']
    #allocation3 [shape = 's32[1]{0}', space=sflag, size = 0x4, scoped, tag = 'scoped memory for actor_forward.1']
    %10 = vsyncpa [#allocation3], 0
    // Predicated region
    $region2: #{actor_forward.1} parent=1 // pred_check
      _
    $region3: #{actor_forward.1} parent=1 // pred_check_branch
      %12 = sbr.rel (0) target = $region5
    $region4: #{actor_forward.1} parent=1 // pred_region
      _
    $region5: #{actor_forward.1} parent=1 // pred_fallthru
      _
    // Predicated region
    $region6: #{actor_forward.1} parent=1 // pred_check
      _
    $region7: #{actor_forward.1} parent=1 // pred_check_branch
      %14 = sbr.rel (0) target = $region9
    $region8: #{actor_forward.1} parent=1 // pred_region
      _
    $region9: #{actor_forward.1} parent=1 // pred_fallthru
      _
    // Predicated region
    $region10: #{actor_forward.1} parent=1 // pred_check
      _
    $region11: #{actor_forward.1} parent=1 // pred_check_branch
      %16 = sbr.rel (0) target = $region13
    $region12: #{actor_forward.1} parent=1 // pred_region
      _
    $region13: #{actor_forward.1} parent=1 // pred_fallthru
      _
    // Predicated region
    $region14: #{actor_forward.1} parent=1 // pred_check
      _
    $region15: #{actor_forward.1} parent=1 // pred_check_branch
      %18 = sbr.rel (0) target = $region17
    $region16: #{actor_forward.1} parent=1 // pred_region
      _
    $region17: #{actor_forward.1} parent=1 // pred_fallthru
      _
    // Predicated region
    $region18: #{actor_forward.1} parent=1 // pred_check
      _
    $region19: #{actor_forward.1} parent=1 // pred_check_branch
      %20 = sbr.rel (0) target = $region21
    $region20: #{actor_forward.1} parent=1 // pred_region
      _
    $region21: #{actor_forward.1} parent=1 // pred_fallthru
      _
    %v22 = vld [vmem:[%s0] sm:$0xf]
    %v23 = vld [vmem:[%s1] sm:$0xf]
    %v24 = vld [vmem:[%s1 + $0x4] sm:$0xf]
    %v25 = vld [vmem:[%s1 + $0x8] sm:$0x1]
    %v26 = vld [vmem:[%s2] sm:$0x1]
    %v28 = vperm.slane %v26, 0
    %v33 = vunpack.c.l.b16 %v23
    %v34 = vunpack.c.l.b16 %v24
    %v35 = vunpack.c.l.b16 %v25
    %v36 = vpack.c.b16 %v34, %v33
    %v37 = vpack.c.b16 %v35, %v35
    %vm39 = vcmask 138240
    %v41 = vsel %vm39, %v22, 0
    %vm43 = vcmask 1040384
    %v44 = vsel 0, 4294967295, 65535
    %v45 = vsel %vm43, %v44, 0
    %v47 = vand.u32 %v37, %v45
    %49 = vmatpush.bf16.msra.mxu0 0
    %50 = vmatpush.bf16.msra.mxu0 0
    %51 = vmatpush.bf16.msra.mxu0 0
    %52 = vmatpush.bf16.msra.mxu0 0
    %53 = vmatpush.bf16.msra.mxu0 0
    %54 = vmatpush.bf16.msra.mxu0 0
    %55 = vmatpush.bf16.msra.mxu0 %v47
    %56 = vmatpush.bf16.msra.mxu0 %v36
    %57 = vmatmul.bf16.gmra.mxu0 %v41
    %v58 = vpop.f32.mrf.mxu0
    %v59 = vadd.f32 %v28, %v58
    %v60 = vpop.f32.mrf.mxu0
    %61 = vdwg.mxu0
    %v62 = vpack.c.bf16 %v59, %v59
    %v63 = vld [vmem:[%s3] sm:$0xf]
    %v64 = vld [vmem:[%s3 + $0x4] sm:$0xf]
    %v65 = vld [vmem:[%s3 + $0x8] sm:$0xf]
    %v66 = vld [vmem:[%s3 + $0xc] sm:$0xf]
    %v67 = vld [vmem:[%s3 + $0x10] sm:$0xf]
    %v68 = vld [vmem:[%s3 + $0x14] sm:$0xf]
    %v69 = vld [vmem:[%s3 + $0x18] sm:$0xf]
    %v70 = vld [vmem:[%s3 + $0x1c] sm:$0xf]
    %v71 = vld [vmem:[%s3 + $0x20] sm:$0xf]
    %v72 = vld [vmem:[%s3 + $0x24] sm:$0xf]
    %v73 = vld [vmem:[%s3 + $0x28] sm:$0xf]
    %v74 = vld [vmem:[%s3 + $0x2c] sm:$0xf]
    %v75 = vld [vmem:[%s3 + $0x30] sm:$0xf]
    %v76 = vld [vmem:[%s3 + $0x34] sm:$0xf]
    %v77 = vld [vmem:[%s3 + $0x38] sm:$0xf]
    %v78 = vld [vmem:[%s3 + $0x3c] sm:$0xf]
    %v79 = vld [vmem:[%s4] sm:$0x1]
    %v81 = vperm.slane %v79, 0
    %v99 = vunpack.c.l.b16 %v63
    %v100 = vunpack.c.l.b16 %v64
    %v101 = vunpack.c.l.b16 %v65
    %v102 = vunpack.c.l.b16 %v66
    %v103 = vunpack.c.l.b16 %v67
    %v104 = vunpack.c.l.b16 %v68
    %v105 = vunpack.c.l.b16 %v69
    %v106 = vunpack.c.l.b16 %v70
    %v107 = vunpack.c.l.b16 %v71
    %v108 = vunpack.c.l.b16 %v72
    %v109 = vunpack.c.l.b16 %v73
    %v110 = vunpack.c.l.b16 %v74
    %v111 = vunpack.c.l.b16 %v75
    %v112 = vunpack.c.l.b16 %v76
    %v113 = vunpack.c.l.b16 %v77
    %v114 = vunpack.c.l.b16 %v78
    %v115 = vpack.c.b16 %v100, %v99
    %v116 = vpack.c.b16 %v102, %v101
    %v117 = vpack.c.b16 %v104, %v103
    %v118 = vpack.c.b16 %v106, %v105
    %v119 = vpack.c.b16 %v108, %v107
    %v120 = vpack.c.b16 %v110, %v109
    %v121 = vpack.c.b16 %v112, %v111
    %v122 = vpack.c.b16 %v114, %v113
    %131 = vmatpush.bf16.msra.mxu0 %v122
    %132 = vmatpush.bf16.msra.mxu0 %v121
    %133 = vmatpush.bf16.msra.mxu0 %v120
    %134 = vmatpush.bf16.msra.mxu0 %v119
    %135 = vmatpush.bf16.msra.mxu0 %v118
    %136 = vmatpush.bf16.msra.mxu0 %v117
    %137 = vmatpush.bf16.msra.mxu0 %v116
    %138 = vmatpush.bf16.msra.mxu0 %v115
    %139 = vmatmul.bf16.gmra.mxu0 %v62
    %v140 = vpop.f32.mrf.mxu0
    %v141 = vadd.f32 %v81, %v140
    %v142 = vpop.f32.mrf.mxu0
    %143 = vdwg.mxu0
    %v144 = vtanh.pop %v141
    %145 = vst [vmem:[#allocation2] sm:$0xff] %v144
    // Predicated region
    $region22: #{actor_forward.1} parent=1 // pred_check
      _
    $region23: #{actor_forward.1} parent=1 // pred_check_branch
      %147 = sbr.rel (0) target = $region25
    $region24: #{actor_forward.1} parent=1 // pred_region
      %149 = vsyncadd [#allocation3], 0
      %s151 = sshll.u32 [#allocation2], 4
      %s152 = int_to_ptr.vmem [resolvable:$true] %s151
      %s153 = sshll.u32 %s5, 4
      %s154 = int_to_ptr.hbm [resolvable:$true] %s153
      %156 = dma.vmem_to_hbm [thread:$0]  %s152, 128, %s154, [#allocation3]
    $region25: #{actor_forward.1} parent=1 // pred_fallthru
      _
    // Predicated region
    $region26: #{actor_forward.1} parent=1 // pred_check
      _
    $region27: #{actor_forward.1} parent=1 // pred_check_branch
      %158 = sbr.rel (0) target = $region29
    $region28: #{actor_forward.1} parent=1 // pred_region
      %160 = dma.done [#allocation3], 128
    $region29: #{actor_forward.1} parent=1 // pred_fallthru
      _
    %161 = vsyncpa [#allocation3], 1

</llo_original>
